<compile_context>
chip_gen: v6e
topology: v6e:2x2x1
jax: 0.10.0
libtpu: 0.0.40
codegen_flags: <defaults>
</compile_context>

<pallas_src>
import jax
import jax.numpy as jnp
from jax import lax
from jax.experimental import pallas as pl
from jax.experimental.pallas import tpu as pltpu


def _downsample_kernel(p_ref, w_ref, b_ref, o_ref):
    """One output-row tile of one batch image.

    p_ref : (1, M, 9C) bf16  im2col'd input patches (M = row_tile * Wo)
    w_ref : (9C, C)    bf16  fused 3x3 conv weight (tap-major, Cin inside tap)
    b_ref : (1, C)     f32   bias
    o_ref : (1, M, C)  f32   output tile
    """
    acc = jnp.dot(p_ref[0], w_ref[...], preferred_element_type=jnp.float32)
    o_ref[0] = (acc + b_ref[...]).astype(o_ref.dtype)


def _pick_row_tile(ho, wo, c, budget_bytes=6 * 1024 * 1024):
    """Largest divisor of Ho whose lhs(bf16)+out(f32) block fits the budget and
    keeps the second-to-last block dim a multiple of 8 (or covers all rows)."""
    per_row = wo * (9 * c * 2 + c * 4)
    valid = [t for t in range(1, ho + 1)
             if ho % t == 0 and (t == ho or (t * wo) % 8 == 0)]
    fitting = [t for t in valid if t * per_row <= budget_bytes]
    return max(fitting) if fitting else min(valid)


def downsample_pallas(x, weight, bias, *, row_tile=None):
    """x: (B, C, H, W) f32.  weight: (C, C, 3, 3) torch OIHW.  bias: (C,)."""
    b, c, h, w = x.shape
    assert weight.shape == (c, c, 3, 3)
    ho = (h - 2) // 2 + 1          # output height after pad(0,1) + k3/s2 conv
    wo = (w - 2) // 2 + 1
    hp, wp = 2 * ho + 1, 2 * wo + 1  # padded extents actually touched by taps

    # ---- layout plumbing (wrapper): NCHW -> NHWC, zero-pad, im2col-lite ----
    xh = jnp.transpose(x, (0, 2, 3, 1))                       # (B, H, W, C)
    xh = jnp.pad(xh, ((0, 0), (0, hp - h), (0, wp - w), (0, 0)))
    xh = xh.astype(jnp.bfloat16)                              # halve DMA bytes
    # tap (ky,kx): chunk[b,i,j,:] = x_pad[b, 2i+ky, 2j+kx, :]
    chunks = [xh[:, ky:ky + 2 * ho:2, kx:kx + 2 * wo:2, :]
              for ky in range(3) for kx in range(3)]
    lhs = jnp.concatenate(chunks, axis=-1).reshape(b, ho * wo, 9 * c)

    # fused weight (9C, C): same tap order, (Cout,Cin) -> (Cin,Cout) per tap
    w9 = jnp.concatenate([weight[:, :, ky, kx].T
                          for ky in range(3) for kx in range(3)], axis=0)
    w9 = w9.astype(jnp.bfloat16)
    b2 = bias.reshape(1, c).astype(jnp.float32)

    # ---- tiling: grid = (batch, output-row tiles), both fully parallel ----
    th = row_tile if row_tile is not None else _pick_row_tile(ho, wo, c)
    assert ho % th == 0 and (th == ho or (th * wo) % 8 == 0), (th, ho, wo)
    m_blk = th * wo
    grid = (b, ho // th)

    cost = pl.CostEstimate(
        flops=2 * b * ho * wo * 9 * c * c,
        transcendentals=0,
        bytes_accessed=(lhs.size * 2 + w9.size * 2 + b2.size * 4
                        + b * ho * wo * c * 4),
    )

    out_flat = pl.pallas_call(
        _downsample_kernel,
        out_shape=jax.ShapeDtypeStruct((b, ho * wo, c), jnp.float32),
        grid_spec=pltpu.PrefetchScalarGridSpec(
            num_scalar_prefetch=0,
            grid=grid,
            in_specs=[
                pl.BlockSpec((1, m_blk, 9 * c), lambda bi, ti: (bi, ti, 0)),
                pl.BlockSpec((9 * c, c), lambda bi, ti: (0, 0)),
                pl.BlockSpec((1, c), lambda bi, ti: (0, 0)),
            ],
            out_specs=pl.BlockSpec((1, m_blk, c), lambda bi, ti: (bi, ti, 0)),
        ),
        compiler_params=pltpu.CompilerParams(
            dimension_semantics=("parallel", "parallel")),
        cost_estimate=cost,
    )(lhs, w9, b2)

    out = out_flat.reshape(b, ho, wo, c)
    return jnp.transpose(out, (0, 3, 1, 2))                   # -> NCHW


def downsample_ref(x, weight, bias):
    """Pure-JAX f32 reference mirroring the PyTorch forward."""
    xp = jnp.pad(x, ((0, 0), (0, 0), (0, 1), (0, 1)))         # pad right/bottom
    out = lax.conv_general_dilated(
        xp, weight, window_strides=(2, 2), padding="VALID",
        dimension_numbers=("NCHW", "OIHW", "NCHW"),
        precision=lax.Precision.HIGHEST)
    return out + bias.reshape(1, -1, 1, 1)


if __name__ == "__main__":
    B, C, H, W = 2, 64, 16, 16
    key = jax.random.PRNGKey(0)
    k1, k2, k3 = jax.random.split(key, 3)

    x = jax.random.normal(k1, (B, C, H, W), dtype=jnp.float32)
    w_scale = 1.0 / (9 * C) ** 0.5
    weight = w_scale * jax.random.normal(k2, (C, C, 3, 3), dtype=jnp.float32)
    bias = 0.1 * jax.random.normal(k3, (C,), dtype=jnp.float32)

    # row_tile=4 -> grid (B, 2): exercises the multi-tile index maps.
    out = jax.block_until_ready(downsample_pallas(x, weight, bias, row_tile=4))
    ref = jax.block_until_ready(downsample_ref(x, weight, bias))

    assert out.shape == (B, C, H // 2, W // 2), out.shape
    max_err = jnp.max(jnp.abs(out - ref))
    # bf16 MXU inputs with f32 accumulation -> ~1e-3..1e-2 abs error vs f32 ref
    assert jnp.allclose(out, ref, atol=3e-2, rtol=3e-2), f"max abs err {max_err}"
    print("KERNEL_OK")
</pallas_src>

<mosaic_0001>
module attributes {stable_mosaic.version = 11 : i64} {
  func.func @_downsample_kernel(%arg0: i32, %arg1: i32, %arg2: memref<1x32x576xbf16, #tpu.memory_space<vmem>>, %arg3: memref<576x64xbf16, #tpu.memory_space<vmem>>, %arg4: memref<1x64xf32, #tpu.memory_space<vmem>>, %arg5: memref<1x32x64xf32, #tpu.memory_space<vmem>>) attributes {dimension_semantics = [#tpu.dimension_semantics<parallel>, #tpu.dimension_semantics<parallel>], iteration_bounds = array<i64: 2, 2>, scalar_prefetch = 0 : i64, scratch_operands = 0 : i64, tpu.core_type = #tpu.core_type<tc>, window_params = [{transform_indices = @transform_0, window_bounds = array<i64: 1, 32, 576>}, {pipeline_mode = #tpu.pipeline_mode<synchronous>, transform_indices = @transform_1, window_bounds = array<i64: 576, 64>}, {pipeline_mode = #tpu.pipeline_mode<synchronous>, transform_indices = @transform_2, window_bounds = array<i64: 1, 64>}, {transform_indices = @transform_3, window_bounds = array<i64: 1, 32, 64>}]} {
    %c0 = arith.constant 0 : index
    %c0_0 = arith.constant 0 : index
    %c0_1 = arith.constant 0 : index
    %0 = vector.load %arg2[%c0, %c0_0, %c0_1] : memref<1x32x576xbf16, #tpu.memory_space<vmem>>, vector<1x32x576xbf16>
    %1 = vector.shape_cast %0 : vector<1x32x576xbf16> to vector<32x576xbf16>
    %c0_2 = arith.constant 0 : index
    %c0_3 = arith.constant 0 : index
    %2 = vector.load %arg3[%c0_2, %c0_3] : memref<576x64xbf16, #tpu.memory_space<vmem>>, vector<576x64xbf16>
    %cst = arith.constant dense<0.000000e+00> : vector<32x64xf32>
    %3 = tpu.matmul %1, %2, %cst {dimension_numbers = #tpu.dot_dimension_numbers<[1], [0], [0], [1], [0, 0, 1, 1], [], []>} : vector<32x576xbf16>, vector<576x64xbf16>, vector<32x64xf32> -> vector<32x64xf32>
    %c0_4 = arith.constant 0 : index
    %c0_5 = arith.constant 0 : index
    %4 = vector.load %arg4[%c0_4, %c0_5] : memref<1x64xf32, #tpu.memory_space<vmem>>, vector<1x64xf32>
    %5 = vector.broadcast %4 : vector<1x64xf32> to vector<32x64xf32>
    %6 = arith.addf %3, %5 : vector<32x64xf32>
    %c0_6 = arith.constant 0 : index
    %c0_7 = arith.constant 0 : index
    %c0_8 = arith.constant 0 : index
    %7 = vector.load %arg5[%c0_6, %c0_7, %c0_8] : memref<1x32x64xf32, #tpu.memory_space<vmem>>, vector<1x32x64xf32>
    %8 = vector.shape_cast %7 : vector<1x32x64xf32> to vector<32x64xf32>
    %9 = vector.shape_cast %6 : vector<32x64xf32> to vector<1x32x64xf32>
    tpu.vector_store %arg5[%c0_6, %c0_7, %c0_8], %9 {strides = array<i32>} : memref<1x32x64xf32, #tpu.memory_space<vmem>>, vector<1x32x64xf32>,
    return
  }
  func.func @transform_0(%arg0: i32, %arg1: i32) -> (i32, i32, i32) {
    %c0_i32 = arith.constant 0 : i32
    %c0_i32_0 = arith.constant 0 : i32
    return %arg0, %arg1, %c0_i32 : i32, i32, i32
  }
  func.func @transform_1(%arg0: i32, %arg1: i32) -> (i32, i32) {
    %c0_i32 = arith.constant 0 : i32
    %c0_i32_0 = arith.constant 0 : i32
    %c0_i32_1 = arith.constant 0 : i32
    return %c0_i32, %c0_i32_0 : i32, i32
  }
  func.func @transform_2(%arg0: i32, %arg1: i32) -> (i32, i32) {
    %c0_i32 = arith.constant 0 : i32
    %c0_i32_0 = arith.constant 0 : i32
    %c0_i32_1 = arith.constant 0 : i32
    return %c0_i32, %c0_i32_0 : i32, i32
  }
  func.func @transform_3(%arg0: i32, %arg1: i32) -> (i32, i32, i32) {
    %c0_i32 = arith.constant 0 : i32
    %c0_i32_0 = arith.constant 0 : i32
    return %arg0, %arg1, %c0_i32 : i32, i32, i32
  }
}

</mosaic_0001>

<llo_original>
// kernel: tpu_custom_call.1
$region0: #{tpu_custom_call.1}
  #allocation0 [shape = 'u32[]', space=smem, size = 0x4, offset = 0x4, fixed_abs, tag = 'smem constant byte address 0x4 - core index']
  #allocation1 [shape = 'u32[144,128]{1,0:T(1,128)}', space=vmem, size = 0x12000, scoped, tag = 'internal scratch']
  %s0 = inlined_call_operand.vmem [shape: bf16[2,64,576], index: 0, kind: input, shape index: {}]
  %s1 = inlined_call_operand.vmem [shape: bf16[576,64], index: 1, kind: input, shape index: {}]
  %s2 = inlined_call_operand.vmem [shape: f32[1,64], index: 2, kind: input, shape index: {}]
  %s3 = inlined_call_operand.hbm [shape: f32[2,64,64], index: 3, kind: output, shape index: {}]
  %s4 = sld [smem:[#allocation0]]
  $region45: #{tpu_custom_call.1} parent=0
    _
  %s6 = ssub.s32 1, %s4
  %s7 = scalar_select 0, %s6, %s4
  $region1: #{tpu_custom_call.1} parent=0
    #allocation2 [shape = 'u8[32768]{0}', space=vmem, size = 0x8000, scoped, tag = 'output window, operand 0']
    #allocation3 [shape = 's32[2]{0}', space=sflag, size = 0x8, scoped, tag = 'scoped memory for tpu_custom_call.1']
    %8 = vsyncpa [#allocation3], 0
    %s9 = scalar_lea.sflag [#allocation3], 1
    %10 = vsyncpa %s9, 0
    loop: start=0, step=1, limit=6
    $region2: #{tpu_custom_call.1} parent=1 // loop_pre_header
      _
    $region3: #{tpu_custom_call.1} parent=1 // loop_header
      %s12 = sphi 0, %s16
      %p13 = scmp.ge.s32.totalorder %s12, 6
      %s19 = sphi 0, %s31
      %s20 = sphi 0, %s27
      %s21 = sphi 0, %s19
      %s22 = sphi 0, %s20
      %s23 = sphi 0, %s21
      %s24 = sphi 0, %s22
      %s36 = sphi 0, %s38
      %s39 = sphi 0, %s36
      %s40 = sphi 0, %s39
      %s56 = sphi 0, %s40
      %s60 = sphi 0, %s60
      %s62 = sphi 0, %s60
      %s63 = sphi 0, %s62
      %s77 = sphi 0, %s63
      %s81 = sphi 0, %s81
      %s83 = sphi 0, %s81
      %s84 = sphi 0, %s83
      %s98 = sphi 0, %s84
      %s106 = sphi 0, %s108
      %s109 = sphi 0, %s106
      %s110 = sphi 0, %s109
      %s126 = sphi 0, %s110
    $region4: #{tpu_custom_call.1} parent=1 // loop_header_branch
      %15 = sbr.rel (%p13) target = $region8
    $region5: #{tpu_custom_call.1} parent=1 // loop_body
      %s17 = ssub.s32 %s12, 1
      %s18 = ssub.s32 %s12, 2
      %s25 = sadd.s32 1, %s20
      %p26 = scmp.ge.s32.totalorder %s25, 2
      %s27 = scalar_select %p26, 0, %s25
      %s28 = sadd.s32 1, %s19
      %s29 = scalar_select %p26, %s28, %s19
      %p30 = scmp.ge.s32.totalorder %s29, 2
      %s31 = scalar_select %p30, 0, %s29
      %s32 = ssub.s32 %s19, %s31
      %s33 = ssub.s32 %s20, %s27
      %s34 = sor.u32 %s32, %s33
      %p35 = scmp.eq.s32.totalorder %s34, 0
      %s37 = sadd.s32 %s36, 1
      %s38 = scalar_select %p35, %s36, %s37
      %p41 = pneg %p35
      %p42 = scmp.eq.s32.totalorder %s12, 3
      %p43 = por %p41, %p42
      %p44 = scmp.ne.s32.totalorder %s36, %s39
      %p45 = scmp.eq.s32.totalorder %s12, 0
      %p46 = por %p44, %p45
      %p47 = scmp.ne.s32.totalorder %s36, %s39
      %p48 = scmp.eq.s32.totalorder %s17, 3
      %p49 = por %p47, %p48
      %p50 = scmp.ne.s32.totalorder %s39, %s40
      %p51 = scmp.eq.s32.totalorder %s17, 0
      %p52 = por %p50, %p51
      %p53 = scmp.ne.s32.totalorder %s39, %s40
      %p54 = scmp.eq.s32.totalorder %s18, 3
      %p55 = por %p53, %p54
      %p57 = scmp.ne.s32.totalorder %s40, %s56
      %p58 = scmp.eq.s32.totalorder %s18, 0
      %p59 = por %p57, %p58
      %s61 = sadd.s32 %s60, 1
      %p64 = scmp.eq.s32.totalorder %s12, 3
      %p65 = scmp.ne.s32.totalorder %s60, %s62
      %p66 = scmp.eq.s32.totalorder %s12, 0
      %p67 = por %p65, %p66
      %p68 = scmp.ne.s32.totalorder %s60, %s62
      %p69 = scmp.eq.s32.totalorder %s17, 3
      %p70 = por %p68, %p69
      %p71 = scmp.ne.s32.totalorder %s62, %s63
      %p72 = scmp.eq.s32.totalorder %s17, 0
      %p73 = por %p71, %p72
      %p74 = scmp.ne.s32.totalorder %s62, %s63
      %p75 = scmp.eq.s32.totalorder %s18, 3
      %p76 = por %p74, %p75
      %p78 = scmp.ne.s32.totalorder %s63, %s77
      %p79 = scmp.eq.s32.totalorder %s18, 0
      %p80 = por %p78, %p79
      %s82 = sadd.s32 %s81, 1
      %p85 = scmp.eq.s32.totalorder %s12, 3
      %p86 = scmp.ne.s32.totalorder %s81, %s83
      %p87 = scmp.eq.s32.totalorder %s12, 0
      %p88 = por %p86, %p87
      %p89 = scmp.ne.s32.totalorder %s81, %s83
      %p90 = scmp.eq.s32.totalorder %s17, 3
      %p91 = por %p89, %p90
      %p92 = scmp.ne.s32.totalorder %s83, %s84
      %p93 = scmp.eq.s32.totalorder %s17, 0
      %p94 = por %p92, %p93
      %p95 = scmp.ne.s32.totalorder %s83, %s84
      %p96 = scmp.eq.s32.totalorder %s18, 3
      %p97 = por %p95, %p96
      %p99 = scmp.ne.s32.totalorder %s84, %s98
      %p100 = scmp.eq.s32.totalorder %s18, 0
      %p101 = por %p99, %p100
      %s102 = ssub.s32 %s19, %s31
      %s103 = ssub.s32 %s20, %s27
      %s104 = sor.u32 %s102, %s103
      %p105 = scmp.eq.s32.totalorder %s104, 0
      %s107 = sadd.s32 %s106, 1
      %s108 = scalar_select %p105, %s106, %s107
      %p111 = pneg %p105
      %p112 = scmp.eq.s32.totalorder %s12, 3
      %p113 = por %p111, %p112
      %p114 = scmp.ne.s32.totalorder %s106, %s109
      %p115 = scmp.eq.s32.totalorder %s12, 0
      %p116 = por %p114, %p115
      %p117 = scmp.ne.s32.totalorder %s106, %s109
      %p118 = scmp.eq.s32.totalorder %s17, 3
      %p119 = por %p117, %p118
      %p120 = scmp.ne.s32.totalorder %s109, %s110
      %p121 = scmp.eq.s32.totalorder %s17, 0
      %p122 = por %p120, %p121
      %p123 = scmp.ne.s32.totalorder %s109, %s110
      %p124 = scmp.eq.s32.totalorder %s18, 3
      %p125 = por %p123, %p124
      %p127 = scmp.ne.s32.totalorder %s110, %s126
      %p128 = scmp.eq.s32.totalorder %s18, 0
      %p129 = por %p127, %p128
      %p130 = scmp.le.s32.totalorder 1, %s12
      %p131 = scmp.lt.s32.totalorder %s12, 5
      %p132 = pnand %p130, %p131
      %p133 = pneg %p132
      // Predicated region
      $region9: #{tpu_custom_call.1} parent=5 // pred_check
        _
      $region10: #{tpu_custom_call.1} parent=5 // pred_check_branch
        %135 = sbr.rel (%p132) target = $region12
      $region11: #{tpu_custom_call.1} parent=5 // pred_region
        %s136 = ssub.s32 %s12, 1
        // Predicated region
        $region13: #{tpu_custom_call.1} parent=11 // pred_check
          %p137 = pneg %p73
        $region14: #{tpu_custom_call.1} parent=11 // pred_check_branch
          %139 = sbr.rel (%p137) target = $region16
        $region15: #{tpu_custom_call.1} parent=11 // pred_region
          _
        $region16: #{tpu_custom_call.1} parent=11 // pred_fallthru
          _
        // Predicated region
        $region17: #{tpu_custom_call.1} parent=11 // pred_check
          %p140 = pneg %p94
        $region18: #{tpu_custom_call.1} parent=11 // pred_check_branch
          %142 = sbr.rel (%p140) target = $region20
        $region19: #{tpu_custom_call.1} parent=11 // pred_region
          _
        $region20: #{tpu_custom_call.1} parent=11 // pred_fallthru
          _
      $region12: #{tpu_custom_call.1} parent=5 // pred_fallthru
        _
      %p143 = scmp.lt.s32.totalorder %s12, 4
      // Predicated region
      $region21: #{tpu_custom_call.1} parent=5 // pred_check
        %p144 = pneg %p143
      $region22: #{tpu_custom_call.1} parent=5 // pred_check_branch
        %146 = sbr.rel (%p144) target = $region24
      $region23: #{tpu_custom_call.1} parent=5 // pred_region
        // Predicated region
        $region25: #{tpu_custom_call.1} parent=23 // pred_check
          %p147 = pneg %p46
        $region26: #{tpu_custom_call.1} parent=23 // pred_check_branch
          %149 = sbr.rel (%p147) target = $region28
        $region27: #{tpu_custom_call.1} parent=23 // pred_region
          %s150 = smul.u32 4, %s20
          %p151 = scmp.lt.s32.totalorder %s19, 1
          %s152 = scalar_select %p151, %s19, 1
          %p153 = scmp.lt.s32.totalorder %s150, 7
          %s154 = scalar_select %p153, %s150, 7
          %s155 = smul.addr %s154, 5
          %s156 = smul.addr %s152, 40
          %s157 = sadd.s32 %s155, %s156
          %s158 = smul.addr %s157, 4
          %s159 = scalar_lea.vmem %s0, %s158
          %s160 = smul.u32 4, %s20
        $region28: #{tpu_custom_call.1} parent=23 // pred_fallthru
          _
      $region24: #{tpu_custom_call.1} parent=5 // pred_fallthru
        _
      %p161 = scmp.le.s32.totalorder 1, %s12
      %p162 = scmp.lt.s32.totalorder %s12, 5
      %p163 = pnand %p161, %p162
      %p164 = pneg %p163
      // Predicated region
      $region29: #{tpu_custom_call.1} parent=5 // pred_check
        _
      $region30: #{tpu_custom_call.1} parent=5 // pred_check_branch
        %166 = sbr.rel (%p163) target = $region32
      $region31: #{tpu_custom_call.1} parent=5 // pred_region
        %s167 = ssub.s32 %s12, 1
        %s168 = smul.u32 4, %s22
        %p169 = scmp.lt.s32.totalorder %s21, 1
        %s170 = scalar_select %p169, %s21, 1
        %p171 = scmp.lt.s32.totalorder %s168, 7
        %s172 = scalar_select %p171, %s168, 7
        %s173 = smul.addr %s172, 5
        %s174 = smul.addr %s170, 40
        %s175 = sadd.s32 %s173, %s174
        %s176 = smul.addr %s175, 4
        %s177 = scalar_lea.vmem %s0, %s176
        %p178 = pneg %p52
        %p179 = pneg %p49
        %p180 = pneg %p73
        %p181 = pneg %p70
        %p182 = pneg %p94
        %p183 = pneg %p91
        %p184 = pneg %p122
        %p185 = pneg %p119
        %s186 = sand.u32 %s109, 1
        %s187 = scalar_lea.sflag [#allocation3], %s186
        %s188 = sand.u32 %s109, 1
        %s189 = smul.addr %s188, 32
        %s190 = scalar_lea.vmem [#allocation2], %s189
        %s191 = smul.u32 4, %s22
        %p192 = scmp.lt.s32.totalorder %s21, 1
        %s193 = scalar_select %p192, %s21, 1
        %p194 = scmp.lt.s32.totalorder %s191, 7
        %s195 = scalar_select %p194, %s191, 7
        %s196 = smul.addr %s195, 5
        %s197 = smul.addr %s193, 40
        %s198 = sadd.s32 %s196, %s197
        %s199 = smul.addr %s198, 4
        %s200 = scalar_lea.vmem %s0, %s199
        %s201 = smul.u32 4, %s22
        %s202 = smul.u32 4, %s22
        %v204 = vld [vmem:[%s200] sm:$0xff]
        %v205 = vld [vmem:[%s200 + $0x8] sm:$0xff]
        %v206 = vld [vmem:[%s200 + $0x10] sm:$0xf]
        %v207 = vld [vmem:[%s200 + $0x14] sm:$0xff]
        %v208 = vld [vmem:[%s200 + $0x1c] sm:$0xff]
        %v209 = vld [vmem:[%s200 + $0x24] sm:$0xf]
        %v210 = vld [vmem:[%s200 + $0x28] sm:$0xff]
        %v211 = vld [vmem:[%s200 + $0x30] sm:$0xff]
        %v212 = vld [vmem:[%s200 + $0x38] sm:$0xf]
        %v213 = vld [vmem:[%s200 + $0x3c] sm:$0xff]
        %v214 = vld [vmem:[%s200 + $0x44] sm:$0xff]
        %v215 = vld [vmem:[%s200 + $0x4c] sm:$0xf]
        %v216 = vld [vmem:[%s1] sm:$0xf]
        %v217 = vld [vmem:[%s1 + $0x4] sm:$0xf]
        %v218 = vld [vmem:[%s1 + $0x8] sm:$0xf]
        %v219 = vld [vmem:[%s1 + $0xc] sm:$0xf]
        %v220 = vld [vmem:[%s1 + $0x10] sm:$0xf]
        %v221 = vld [vmem:[%s1 + $0x14] sm:$0xf]
        %v222 = vld [vmem:[%s1 + $0x18] sm:$0xf]
        %v223 = vld [vmem:[%s1 + $0x1c] sm:$0xf]
        %v224 = vld [vmem:[%s1 + $0x20] sm:$0xf]
        %v225 = vld [vmem:[%s1 + $0x24] sm:$0xf]
        %v226 = vld [vmem:[%s1 + $0x28] sm:$0xf]
        %v227 = vld [vmem:[%s1 + $0x2c] sm:$0xf]
        %v228 = vld [vmem:[%s1 + $0x30] sm:$0xf]
        %v229 = vld [vmem:[%s1 + $0x34] sm:$0xf]
        %v230 = vld [vmem:[%s1 + $0x38] sm:$0xf]
        %v231 = vld [vmem:[%s1 + $0x3c] sm:$0xf]
        %v232 = vld [vmem:[%s1 + $0x40] sm:$0xf]
        %v233 = vld [vmem:[%s1 + $0x44] sm:$0xf]
        %v234 = vld [vmem:[%s1 + $0x48] sm:$0xf]
        %v235 = vld [vmem:[%s1 + $0x4c] sm:$0xf]
        %v236 = vld [vmem:[%s1 + $0x50] sm:$0xf]
        %v237 = vld [vmem:[%s1 + $0x54] sm:$0xf]
        %v238 = vld [vmem:[%s1 + $0x58] sm:$0xf]
        %v239 = vld [vmem:[%s1 + $0x5c] sm:$0xf]
        %v240 = vld [vmem:[%s1 + $0x60] sm:$0xf]
        %v241 = vld [vmem:[%s1 + $0x64] sm:$0xf]
        %v242 = vld [vmem:[%s1 + $0x68] sm:$0xf]
        %v243 = vld [vmem:[%s1 + $0x6c] sm:$0xf]
        %v244 = vld [vmem:[%s1 + $0x70] sm:$0xf]
        %v245 = vld [vmem:[%s1 + $0x74] sm:$0xf]
        %v246 = vld [vmem:[%s1 + $0x78] sm:$0xf]
        %v247 = vld [vmem:[%s1 + $0x7c] sm:$0xf]
        %v248 = vld [vmem:[%s1 + $0x80] sm:$0xf]
        %v249 = vld [vmem:[%s1 + $0x84] sm:$0xf]
        %v250 = vld [vmem:[%s1 + $0x88] sm:$0xf]
        %v251 = vld [vmem:[%s1 + $0x8c] sm:$0xf]
        %v252 = vld [vmem:[%s1 + $0x90] sm:$0xf]
        %v253 = vld [vmem:[%s1 + $0x94] sm:$0xf]
        %v254 = vld [vmem:[%s1 + $0x98] sm:$0xf]
        %v255 = vld [vmem:[%s1 + $0x9c] sm:$0xf]
        %v256 = vld [vmem:[%s1 + $0xa0] sm:$0xf]
        %v257 = vld [vmem:[%s1 + $0xa4] sm:$0xf]
        %v258 = vld [vmem:[%s1 + $0xa8] sm:$0xf]
        %v259 = vld [vmem:[%s1 + $0xac] sm:$0xf]
        %v260 = vld [vmem:[%s1 + $0xb0] sm:$0xf]
        %v261 = vld [vmem:[%s1 + $0xb4] sm:$0xf]
        %v262 = vld [vmem:[%s1 + $0xb8] sm:$0xf]
        %v263 = vld [vmem:[%s1 + $0xbc] sm:$0xf]
        %v264 = vld [vmem:[%s1 + $0xc0] sm:$0xf]
        %v265 = vld [vmem:[%s1 + $0xc4] sm:$0xf]
        %v266 = vld [vmem:[%s1 + $0xc8] sm:$0xf]
        %v267 = vld [vmem:[%s1 + $0xcc] sm:$0xf]
        %v268 = vld [vmem:[%s1 + $0xd0] sm:$0xf]
        %v269 = vld [vmem:[%s1 + $0xd4] sm:$0xf]
        %v270 = vld [vmem:[%s1 + $0xd8] sm:$0xf]
        %v271 = vld [vmem:[%s1 + $0xdc] sm:$0xf]
        %v272 = vld [vmem:[%s1 + $0xe0] sm:$0xf]
        %v273 = vld [vmem:[%s1 + $0xe4] sm:$0xf]
        %v274 = vld [vmem:[%s1 + $0xe8] sm:$0xf]
        %v275 = vld [vmem:[%s1 + $0xec] sm:$0xf]
        %v276 = vld [vmem:[%s1 + $0xf0] sm:$0xf]
        %v277 = vld [vmem:[%s1 + $0xf4] sm:$0xf]
        %v278 = vld [vmem:[%s1 + $0xf8] sm:$0xf]
        %v279 = vld [vmem:[%s1 + $0xfc] sm:$0xf]
        %v280 = vld [vmem:[%s1 + $0x100] sm:$0xf]
        %v281 = vld [vmem:[%s1 + $0x104] sm:$0xf]
        %v282 = vld [vmem:[%s1 + $0x108] sm:$0xf]
        %v283 = vld [vmem:[%s1 + $0x10c] sm:$0xf]
        %v284 = vld [vmem:[%s1 + $0x110] sm:$0xf]
        %v285 = vld [vmem:[%s1 + $0x114] sm:$0xf]
        %v286 = vld [vmem:[%s1 + $0x118] sm:$0xf]
        %v287 = vld [vmem:[%s1 + $0x11c] sm:$0xf]
        %v288 = vld [vmem:[%s2] sm:$0x1]
        %v290 = vlaneseq
        %v291 = vshrl.u32 %v290, 7
        %v292 = vsub.s32 0, %v291
        %v293 = vrot.slane %v288, %v292
        %v307 = vunpack.c.l.b16 %v204
        %v308 = vunpack.c.h.b16 %v204
        %v309 = vunpack.c.l.b16 %v205
        %v310 = vunpack.c.h.b16 %v205
        %v311 = vunpack.c.l.b16 %v206
        %v312 = vunpack.c.l.b16 %v207
        %v313 = vunpack.c.h.b16 %v207
        %v314 = vunpack.c.l.b16 %v208
        %v315 = vunpack.c.h.b16 %v208
        %v316 = vunpack.c.l.b16 %v209
        %v317 = vunpack.c.l.b16 %v210
        %v318 = vunpack.c.h.b16 %v210
        %v319 = vunpack.c.l.b16 %v211
        %v320 = vunpack.c.h.b16 %v211
        %v321 = vunpack.c.l.b16 %v212
        %v322 = vunpack.c.l.b16 %v213
        %v323 = vunpack.c.h.b16 %v213
        %v324 = vunpack.c.l.b16 %v214
        %v325 = vunpack.c.h.b16 %v214
        %v326 = vunpack.c.l.b16 %v215
        %v327 = vpack.c.b16 %v312, %v307
        %v328 = vpack.c.b16 %v313, %v308
        %v329 = vpack.c.b16 %v314, %v309
        %v330 = vpack.c.b16 %v315, %v310
        %v331 = vpack.c.b16 %v316, %v311
        %v332 = vpack.c.b16 %v322, %v317
        %v333 = vpack.c.b16 %v323, %v318
        %v334 = vpack.c.b16 %v324, %v319
        %v335 = vpack.c.b16 %v325, %v320
        %v336 = vpack.c.b16 %v326, %v321
        %v417 = vunpack.c.l.b16 %v216
        %v418 = vunpack.c.l.b16 %v217
        %v419 = vunpack.c.l.b16 %v218
        %v420 = vunpack.c.l.b16 %v219
        %v421 = vunpack.c.l.b16 %v220
        %v422 = vunpack.c.l.b16 %v221
        %v423 = vunpack.c.l.b16 %v222
        %v424 = vunpack.c.l.b16 %v223
        %v425 = vunpack.c.l.b16 %v224
        %v426 = vunpack.c.l.b16 %v225
        %v427 = vunpack.c.l.b16 %v226
        %v428 = vunpack.c.l.b16 %v227
        %v429 = vunpack.c.l.b16 %v228
        %v430 = vunpack.c.l.b16 %v229
        %v431 = vunpack.c.l.b16 %v230
        %v432 = vunpack.c.l.b16 %v231
        %v433 = vunpack.c.l.b16 %v232
        %v434 = vunpack.c.l.b16 %v233
        %v435 = vunpack.c.l.b16 %v234
        %v436 = vunpack.c.l.b16 %v235
        %v437 = vunpack.c.l.b16 %v236
        %v438 = vunpack.c.l.b16 %v237
        %v439 = vunpack.c.l.b16 %v238
        %v440 = vunpack.c.l.b16 %v239
        %v441 = vunpack.c.l.b16 %v240
        %v442 = vunpack.c.l.b16 %v241
        %v443 = vunpack.c.l.b16 %v242
        %v444 = vunpack.c.l.b16 %v243
        %v445 = vunpack.c.l.b16 %v244
        %v446 = vunpack.c.l.b16 %v245
        %v447 = vunpack.c.l.b16 %v246
        %v448 = vunpack.c.l.b16 %v247
        %v449 = vunpack.c.l.b16 %v248
        %v450 = vunpack.c.l.b16 %v249
        %v451 = vunpack.c.l.b16 %v250
        %v452 = vunpack.c.l.b16 %v251
        %v453 = vunpack.c.l.b16 %v252
        %v454 = vunpack.c.l.b16 %v253
        %v455 = vunpack.c.l.b16 %v254
        %v456 = vunpack.c.l.b16 %v255
        %v457 = vunpack.c.l.b16 %v256
        %v458 = vunpack.c.l.b16 %v257
        %v459 = vunpack.c.l.b16 %v258
        %v460 = vunpack.c.l.b16 %v259
        %v461 = vunpack.c.l.b16 %v260
        %v462 = vunpack.c.l.b16 %v261
        %v463 = vunpack.c.l.b16 %v262
        %v464 = vunpack.c.l.b16 %v263
        %v465 = vunpack.c.l.b16 %v264
        %v466 = vunpack.c.l.b16 %v265
        %v467 = vunpack.c.l.b16 %v266
        %v468 = vunpack.c.l.b16 %v267
        %v469 = vunpack.c.l.b16 %v268
        %v470 = vunpack.c.l.b16 %v269
        %v471 = vunpack.c.l.b16 %v270
        %v472 = vunpack.c.l.b16 %v271
        %v473 = vunpack.c.l.b16 %v272
        %v474 = vunpack.c.l.b16 %v273
        %v475 = vunpack.c.l.b16 %v274
        %v476 = vunpack.c.l.b16 %v275
        %v477 = vunpack.c.l.b16 %v276
        %v478 = vunpack.c.l.b16 %v277
        %v479 = vunpack.c.l.b16 %v278
        %v480 = vunpack.c.l.b16 %v279
        %v481 = vunpack.c.l.b16 %v280
        %v482 = vunpack.c.l.b16 %v281
        %v483 = vunpack.c.l.b16 %v282
        %v484 = vunpack.c.l.b16 %v283
        %v485 = vunpack.c.l.b16 %v284
        %v486 = vunpack.c.l.b16 %v285
        %v487 = vunpack.c.l.b16 %v286
        %v488 = vunpack.c.l.b16 %v287
        %v489 = vpack.c.b16 %v418, %v417
        %v490 = vpack.c.b16 %v420, %v419
        %v491 = vpack.c.b16 %v422, %v421
        %v492 = vpack.c.b16 %v424, %v423
        %v493 = vpack.c.b16 %v426, %v425
        %v494 = vpack.c.b16 %v428, %v427
        %v495 = vpack.c.b16 %v430, %v429
        %v496 = vpack.c.b16 %v432, %v431
        %v497 = vpack.c.b16 %v434, %v433
        %v498 = vpack.c.b16 %v436, %v435
        %v499 = vpack.c.b16 %v438, %v437
        %v500 = vpack.c.b16 %v440, %v439
        %v501 = vpack.c.b16 %v442, %v441
        %v502 = vpack.c.b16 %v444, %v443
        %v503 = vpack.c.b16 %v446, %v445
        %v504 = vpack.c.b16 %v448, %v447
        %v505 = vpack.c.b16 %v450, %v449
        %v506 = vpack.c.b16 %v452, %v451
        %v507 = vpack.c.b16 %v454, %v453
        %v508 = vpack.c.b16 %v456, %v455
        %v509 = vpack.c.b16 %v458, %v457
        %v510 = vpack.c.b16 %v460, %v459
        %v511 = vpack.c.b16 %v462, %v461
        %v512 = vpack.c.b16 %v464, %v463
        %v513 = vpack.c.b16 %v466, %v465
        %v514 = vpack.c.b16 %v468, %v467
        %v515 = vpack.c.b16 %v470, %v469
        %v516 = vpack.c.b16 %v472, %v471
        %v517 = vpack.c.b16 %v474, %v473
        %v518 = vpack.c.b16 %v476, %v475
        %v519 = vpack.c.b16 %v478, %v477
        %v520 = vpack.c.b16 %v480, %v479
        %v521 = vpack.c.b16 %v482, %v481
        %v522 = vpack.c.b16 %v484, %v483
        %v523 = vpack.c.b16 %v486, %v485
        %v524 = vpack.c.b16 %v488, %v487
        %vm561 = vcmask 523264
        %v563 = vsel %vm561, %v331, 0
        %v566 = vsel %vm561, %v336, 0
        %568 = vmatprep.subr.bf16.mxu0 0
        %569 = vmatpush1.bf16.msra.mxu0 %v496
        %570 = vmatprep.subr.bf16.mxu0 0
        %571 = vmatpush1.bf16.msra.mxu0 %v495
        %572 = vmatprep.subr.bf16.mxu0 0
        %573 = vmatpush1.bf16.msra.mxu0 %v494
        %574 = vmatprep.subr.bf16.mxu0 0
        %575 = vmatpush1.bf16.msra.mxu0 %v493
        %576 = vmatprep.subr.bf16.mxu0 0
        %577 = vmatpush1.bf16.msra.mxu0 %v492
        %578 = vmatprep.subr.bf16.mxu0 0
        %579 = vmatpush1.bf16.msra.mxu0 %v491
        %580 = vmatprep.subr.bf16.mxu0 0
        %581 = vmatpush1.bf16.msra.mxu0 %v490
        %582 = vmatprep.subr.bf16.mxu0 0
        %583 = vmatpush1.bf16.msra.mxu0 %v489
        %584 = vmatprep.subr.bf16.mxu0 0
        %585 = vmatpush2.bf16.msra.mxu0 %v504
        %586 = vmatprep.subr.bf16.mxu0 0
        %587 = vmatpush2.bf16.msra.mxu0 %v503
        %588 = vmatprep.subr.bf16.mxu0 0
        %589 = vmatpush2.bf16.msra.mxu0 %v502
        %590 = vmatprep.subr.bf16.mxu0 0
        %591 = vmatpush2.bf16.msra.mxu0 %v501
        %592 = vmatprep.subr.bf16.mxu0 0
        %593 = vmatpush2.bf16.msra.mxu0 %v500
        %594 = vmatprep.subr.bf16.mxu0 0
        %595 = vmatpush2.bf16.msra.mxu0 %v499
        %596 = vmatprep.subr.bf16.mxu0 0
        %597 = vmatpush2.bf16.msra.mxu0 %v498
        %598 = vmatprep.subr.bf16.mxu0 0
        %599 = vmatpush2.bf16.msra.mxu0 %v497
        %600 = vmatprep.mubr.bf16.mxu0 %v328
        %601 = vmatmul.mubr.bf16.gmra.mxu0 %v327
        %v602 = vpop.f32.mrf.mxu0
        %v603 = vadd.f32 %v293, %v602
        %v604 = vpop.f32.mrf.mxu0
        %v605 = vpop.f32.mrf.mxu0
        %v606 = vadd.f32 %v293, %v605
        %v607 = vpop.f32.mrf.mxu0
        %608 = vmatprep.mubr.bf16.mxu0 %v333
        %609 = vmatmul.mubr.bf16.gmra.mxu0 %v332
        %v610 = vpop.f32.mrf.mxu0
        %v611 = vadd.f32 %v293, %v610
        %v612 = vpop.f32.mrf.mxu0
        %v613 = vpop.f32.mrf.mxu0
        %v614 = vadd.f32 %v293, %v613
        %v615 = vpop.f32.mrf.mxu0
        %616 = vdwg.mxu0
        %617 = vmatprep.subr.bf16.mxu0 0
        %618 = vmatpush1.bf16.msra.mxu0 %v512
        %619 = vmatprep.subr.bf16.mxu0 0
        %620 = vmatpush1.bf16.msra.mxu0 %v511
        %621 = vmatprep.subr.bf16.mxu0 0
        %622 = vmatpush1.bf16.msra.mxu0 %v510
        %623 = vmatprep.subr.bf16.mxu0 0
        %624 = vmatpush1.bf16.msra.mxu0 %v509
        %625 = vmatprep.subr.bf16.mxu0 0
        %626 = vmatpush1.bf16.msra.mxu0 %v508
        %627 = vmatprep.subr.bf16.mxu0 0
        %628 = vmatpush1.bf16.msra.mxu0 %v507
        %629 = vmatprep.subr.bf16.mxu0 0
        %630 = vmatpush1.bf16.msra.mxu0 %v506
        %631 = vmatprep.subr.bf16.mxu0 0
        %632 = vmatpush1.bf16.msra.mxu0 %v505
        %633 = vmatprep.subr.bf16.mxu0 0
        %634 = vmatpush2.bf16.msra.mxu0 %v520
        %635 = vmatprep.subr.bf16.mxu0 0
        %636 = vmatpush2.bf16.msra.mxu0 %v519
        %637 = vmatprep.subr.bf16.mxu0 0
        %638 = vmatpush2.bf16.msra.mxu0 %v518
        %639 = vmatprep.subr.bf16.mxu0 0
        %640 = vmatpush2.bf16.msra.mxu0 %v517
        %641 = vmatprep.subr.bf16.mxu0 0
        %642 = vmatpush2.bf16.msra.mxu0 %v516
        %643 = vmatprep.subr.bf16.mxu0 0
        %644 = vmatpush2.bf16.msra.mxu0 %v515
        %645 = vmatprep.subr.bf16.mxu0 0
        %646 = vmatpush2.bf16.msra.mxu0 %v514
        %647 = vmatprep.subr.bf16.mxu0 0
        %648 = vmatpush2.bf16.msra.mxu0 %v513
        %649 = vmatprep.mubr.bf16.mxu0 %v330
        %650 = vmatmul.mubr.bf16.gmra.mxu0 %v329
        %v651 = vpop.f32.mrf.mxu0
        %v652 = vadd.f32 %v603, %v651
        %v653 = vpop.f32.mrf.mxu0
        %v654 = vpop.f32.mrf.mxu0
        %v655 = vadd.f32 %v606, %v654
        %v656 = vpop.f32.mrf.mxu0
        %657 = vmatprep.mubr.bf16.mxu0 %v335
        %658 = vmatmul.mubr.bf16.gmra.mxu0 %v334
        %v659 = vpop.f32.mrf.mxu0
        %v660 = vadd.f32 %v611, %v659
        %v661 = vpop.f32.mrf.mxu0
        %v662 = vpop.f32.mrf.mxu0
        %v663 = vadd.f32 %v614, %v662
        %v664 = vpop.f32.mrf.mxu0
        %665 = vdwg.mxu0
        %666 = vmatprep.subr.bf16.mxu0 0
        %667 = vmatpush1.bf16.msra.mxu0 0
        %668 = vmatprep.subr.bf16.mxu0 0
        %669 = vmatpush1.bf16.msra.mxu0 0
        %670 = vmatprep.subr.bf16.mxu0 0
        %671 = vmatpush1.bf16.msra.mxu0 0
        %672 = vmatprep.subr.bf16.mxu0 0
        %673 = vmatpush1.bf16.msra.mxu0 0
        %674 = vmatprep.subr.bf16.mxu0 0
        %675 = vmatpush1.bf16.msra.mxu0 %v524
        %676 = vmatprep.subr.bf16.mxu0 0
        %677 = vmatpush1.bf16.msra.mxu0 %v523
        %678 = vmatprep.subr.bf16.mxu0 0
        %679 = vmatpush1.bf16.msra.mxu0 %v522
        %680 = vmatprep.subr.bf16.mxu0 0
        %681 = vmatpush1.bf16.msra.mxu0 %v521
        %682 = vmatprep.subr.bf16.mxu0 0
        %683 = vmatpush2.bf16.msra.mxu0 0
        %684 = vmatprep.subr.bf16.mxu0 0
        %685 = vmatpush2.bf16.msra.mxu0 0
        %686 = vmatprep.subr.bf16.mxu0 0
        %687 = vmatpush2.bf16.msra.mxu0 0
        %688 = vmatprep.subr.bf16.mxu0 0
        %689 = vmatpush2.bf16.msra.mxu0 0
        %690 = vmatprep.subr.bf16.mxu0 0
        %691 = vmatpush2.bf16.msra.mxu0 0
        %692 = vmatprep.subr.bf16.mxu0 0
        %693 = vmatpush2.bf16.msra.mxu0 0
        %694 = vmatprep.subr.bf16.mxu0 0
        %695 = vmatpush2.bf16.msra.mxu0 0
        %696 = vmatprep.subr.bf16.mxu0 0
        %697 = vmatpush2.bf16.msra.mxu0 0
        %698 = vmatprep.mubr.bf16.mxu0 0
        %699 = vmatmul.mubr.bf16.gmra.mxu0 %v563
        %v700 = vpop.f32.mrf.mxu0
        %v701 = vadd.f32 %v652, %v700
        %v702 = vpop.f32.mrf.mxu0
        %v703 = vpop.f32.mrf.mxu0
        %v704 = vadd.f32 %v655, %v703
        %v705 = vpop.f32.mrf.mxu0
        %706 = vmatprep.mubr.bf16.mxu0 0
        %707 = vmatmul.mubr.bf16.gmra.mxu0 %v566
        %v708 = vpop.f32.mrf.mxu0
        %v709 = vadd.f32 %v660, %v708
        %v710 = vpop.f32.mrf.mxu0
        %v711 = vpop.f32.mrf.mxu0
        %v712 = vadd.f32 %v663, %v711
        %v713 = vpop.f32.mrf.mxu0
        %714 = vdwg.mxu0
        %715 = vst.msk [vmem:[%s190] sm:$0xff] %vm561, %v701
        %716 = vst.msk [vmem:[%s190 + $0x8] sm:$0xff] %vm561, %v704
        %717 = vst.msk [vmem:[%s190 + $0x10] sm:$0xff] %vm561, %v709
        %718 = vst.msk [vmem:[%s190 + $0x18] sm:$0xff] %vm561, %v712
        %s719 = sand.u32 %s109, 1
        %s720 = scalar_lea.sflag [#allocation3], %s719
        %s721 = sand.u32 %s109, 1
        %s722 = smul.addr %s721, 32
        %s723 = scalar_lea.vmem [#allocation2], %s722
        // Predicated region
        $region33: #{tpu_custom_call.1} parent=31 // pred_check
          %p724 = pneg %p119
        $region34: #{tpu_custom_call.1} parent=31 // pred_check_branch
          %726 = sbr.rel (%p724) target = $region36
        $region35: #{tpu_custom_call.1} parent=31 // pred_region
          %s727 = smul.u32 4, %s22
          %s729 = ssub.s32 512, 512
          %730 = vsyncadd %s720, %s729
          %s731 = smul.addr %s21, 8
          %s732 = sadd.s32 %s727, %s731
          %s733 = smul.addr %s732, 128
          %s734 = scalar_lea.hbm %s3, %s733
          %s735 = sshll.u32 %s723, 4
          %s736 = int_to_ptr.vmem [resolvable:$true] %s735
          %741 = dma.vmem_to_hbm [thread:$0]  %s736, 512, %s734, %s720, 128, 128, 8
        $region36: #{tpu_custom_call.1} parent=31 // pred_fallthru
          _
      $region32: #{tpu_custom_call.1} parent=5 // pred_fallthru
        _
      %p742 = scmp.le.s32.totalorder 2, %s12
      // Predicated region
      $region37: #{tpu_custom_call.1} parent=5 // pred_check
        %p743 = pneg %p742
      $region38: #{tpu_custom_call.1} parent=5 // pred_check_branch
        %745 = sbr.rel (%p743) target = $region40
      $region39: #{tpu_custom_call.1} parent=5 // pred_region
        %s746 = ssub.s32 %s12, 2
        // Predicated region
        $region41: #{tpu_custom_call.1} parent=39 // pred_check
          %p747 = pneg %p125
        $region42: #{tpu_custom_call.1} parent=39 // pred_check_branch
          %749 = sbr.rel (%p747) target = $region44
        $region43: #{tpu_custom_call.1} parent=39 // pred_region
          %s750 = sand.u32 %s110, 1
          %s751 = scalar_lea.sflag [#allocation3], %s750
          %s752 = sand.u32 %s110, 1
          %s753 = smul.addr %s752, 32
          %s754 = scalar_lea.vmem [#allocation2], %s753
          %755 = dma.done %s751, 512
        $region44: #{tpu_custom_call.1} parent=39 // pred_fallthru
          _
      $region40: #{tpu_custom_call.1} parent=5 // pred_fallthru
        _
    $region6: #{tpu_custom_call.1} parent=1 // loop_footer
      %s16 = sadd.s32 1, %s12
    $region7: #{tpu_custom_call.1} parent=1 // loop_footer_branch
      %11 = sbr.rel target = $region3
    $region8: #{tpu_custom_call.1} parent=1 // loop_exit
      _
    %756 = vsyncpa [#allocation3], 1
    %s757 = scalar_lea.sflag [#allocation3], 1
    %758 = vsyncpa %s757, 1

</llo_original>
